<compile_context>
chip_gen: v7x
topology: tpu7x:2x2x1
jax: 0.10.0
libtpu: 0.0.40
codegen_flags: <defaults>
</compile_context>

<pallas_src>
import jax
import jax.numpy as jnp
from jax.experimental import pallas as pl
from jax.experimental.pallas import tpu as pltpu


def _addmean_kernel(f_ref, w_ref, o_ref):
    """f_ref/o_ref: (B, S, 128) or (B, TC) block; w_ref: (B, 2, 1) or (B, 2)."""
    f = f_ref[...].astype(jnp.float32)
    w = w_ref[...].astype(jnp.float32)
    inv_b = 1.0 / f.shape[0]
    mean = jnp.sum(f, axis=0, keepdims=True) * inv_b        # batch mean per element
    w0 = w[:, 0:1]                                          # (B,1[,1]) per-row scalar
    w1 = w[:, 1:2]
    inv = 1.0 / (w0 + w1)                                   # no epsilon (matches ref)
    a = w0 * inv
    c = w1 * inv
    o_ref[...] = (a * f + c * mean).astype(o_ref.dtype)     # 2 vmul + 1 vadd / elem


_VMEM_CEILING_CACHE = [None]


def _vmem_ceiling_bytes():
    """Per-generation VMEM budget (~75% of capacity; conservative fallback)."""
    if _VMEM_CEILING_CACHE[0] is None:
        ceiling = 48 << 20                       # safe on v7x (64 MiB/TC) and v5e/v6e
        try:
            cap = getattr(pltpu.get_tpu_info(), "vmem_capacity_bytes", None)
            if cap:
                ceiling = max((int(cap) * 3) // 4, 16 << 20)  # ~48 MiB v7x, ~96 MiB v6e
        except Exception:
            pass
        _VMEM_CEILING_CACHE[0] = ceiling
    return _VMEM_CEILING_CACHE[0]


def _pick_row_tile(B, R, itemsize, target_block_bytes):
    """Rows per (B, S, 128) block: multiple of 8, or the full extent."""
    s = max(8, (target_block_bytes // (B * 128 * itemsize) // 8) * 8)
    # Keep >= 2 grid steps on problems big enough to matter (v7x megacore).
    if B * R * 128 * itemsize > (512 << 10) and R > 8:
        half = -(-R // 2)
        half = -(-half // 8) * 8
        s = min(s, half)
    return min(s, R)


def _pick_col_tile(B, D, itemsize, target_block_bytes):
    """Columns per (B, TC) block (fallback path): multiple of 128, or full D."""
    tc = max(128, (target_block_bytes // (B * itemsize) // 128) * 128)
    if B * D * itemsize > (512 << 10) and D > 256:
        half = -(-D // 2)
        half = -(-half // 128) * 128
        tc = min(tc, half)
    return min(tc, D)


@jax.jit
def addmean(f, weights):
    """f: (B, 1, n, n), weights: (B, 2) -> (B, 1, n, n) (same dtype as f)."""
    B, C, n, _ = f.shape
    assert C == 1, "ADDMean expects a single channel"
    D = n * n
    out_dtype = f.dtype
    itemsize = jnp.dtype(out_dtype).itemsize
    w = weights.astype(jnp.float32)

    ceiling = _vmem_ceiling_bytes()
    # Real footprint ~= 4x the block (double-buffered in + out); target ~4 MiB
    # blocks but never more than ~60% of the generation's ceiling / 4.
    target_block_bytes = min(4 << 20, (ceiling * 6) // 10 // 4)

    if D % 128 == 0:
        # Sublane/lane-dense layout: (B, R, 128) planes, blocks of S rows.
        R = D // 128
        f_in = f.reshape(B, R, 128)
        w_in = w.reshape(B, 2, 1)
        S = _pick_row_tile(B, R, itemsize, target_block_bytes)
        grid = (pl.cdiv(R, S),)
        block_bytes = B * S * 128 * itemsize
        in_specs = [
            pl.BlockSpec((B, S, 128), lambda r: (0, r, 0)),
            pl.BlockSpec((B, 2, 1), lambda r: (0, 0, 0)),
        ]
        out_spec = pl.BlockSpec((B, S, 128), lambda r: (0, r, 0))
        out_shape = jax.ShapeDtypeStruct((B, R, 128), out_dtype)
    else:
        # Fallback lane-major layout: (B, D) slab, blocks of TC columns.
        f_in = f.reshape(B, D)
        w_in = w
        TC = _pick_col_tile(B, D, itemsize, target_block_bytes)
        grid = (pl.cdiv(D, TC),)
        block_bytes = B * TC * itemsize
        in_specs = [
            pl.BlockSpec((B, TC), lambda c: (0, c)),
            pl.BlockSpec((B, 2), lambda c: (0, 0)),
        ]
        out_spec = pl.BlockSpec((B, TC), lambda c: (0, c))
        out_shape = jax.ShapeDtypeStruct((B, D), out_dtype)

    # Double-buffered (in + out) blocks + weights, with headroom, per-gen cap.
    footprint = 4 * block_bytes + 4 * B * 2 * 4 + (1 << 20)
    vmem_limit = int(min(max((footprint * 5) // 4, 4 << 20), ceiling))

    cost = pl.CostEstimate(
        flops=4 * B * D,                               # mean reduce + blend
        transcendentals=0,
        bytes_accessed=2 * B * D * itemsize + B * 2 * 4,
    )

    out = pl.pallas_call(
        _addmean_kernel,
        out_shape=out_shape,
        grid=grid,
        in_specs=in_specs,
        out_specs=out_spec,
        compiler_params=pltpu.CompilerParams(
            dimension_semantics=("parallel",),
            vmem_limit_bytes=vmem_limit,
        ),
        cost_estimate=cost,
    )(f_in, w_in)

    return out.reshape(B, 1, n, n)


def _reference(f, weights):
    """Pure-JAX reference of the same semantics."""
    B = f.shape[0]
    f32 = f.astype(jnp.float32)
    mean = jnp.mean(f32, axis=0, keepdims=True)             # (1, 1, n, n)
    w0 = weights[:, 0].reshape(B, 1, 1, 1).astype(jnp.float32)
    w1 = weights[:, 1].reshape(B, 1, 1, 1).astype(jnp.float32)
    return (w0 * f32 + w1 * mean) / (w0 + w1)


if __name__ == "__main__":
    key = jax.random.PRNGKey(0)
    k_f, k_w = jax.random.split(key)

    batch_size, n = 2, 16
    f = jax.random.normal(k_f, (batch_size, 1, n, n), dtype=jnp.float32)
    # Deterministic stand-in for the module parameter: th.rand(batch_size, 2).
    weights = jax.random.uniform(k_w, (batch_size, 2), dtype=jnp.float32)

    out = addmean(f, weights)
    out = jax.block_until_ready(out)

    ref = _reference(f, weights)
    assert out.shape == (batch_size, 1, n, n)
    assert out.dtype == f.dtype
    assert jnp.allclose(out.astype(jnp.float32), ref, atol=1e-5, rtol=1e-5), \
        "mismatch vs reference"

    print("KERNEL_OK")
</pallas_src>

<mosaic_0001>
module attributes {stable_mosaic.version = 11 : i64} {
  func.func @_addmean_kernel(%arg0: i32, %arg1: memref<2x2x128xf32, #tpu.memory_space<vmem>>, %arg2: memref<2x2x1xf32, #tpu.memory_space<vmem>>, %arg3: memref<2x2x128xf32, #tpu.memory_space<vmem>>) attributes {dimension_semantics = [#tpu.dimension_semantics<parallel>], iteration_bounds = array<i64: 1>, scalar_prefetch = 0 : i64, scratch_operands = 0 : i64, tpu.core_type = #tpu.core_type<tc>, window_params = [{transform_indices = @transform_0, window_bounds = array<i64: 2, 2, 128>}, {pipeline_mode = #tpu.pipeline_mode<synchronous>, transform_indices = @transform_1, window_bounds = array<i64: 2, 2, 1>}, {transform_indices = @transform_2, window_bounds = array<i64: 2, 2, 128>}]} {
    %c0 = arith.constant 0 : index
    %c0_0 = arith.constant 0 : index
    %c0_1 = arith.constant 0 : index
    %0 = vector.load %arg1[%c0, %c0_0, %c0_1] : memref<2x2x128xf32, #tpu.memory_space<vmem>>, vector<2x2x128xf32>
    %c0_2 = arith.constant 0 : index
    %c0_3 = arith.constant 0 : index
    %c0_4 = arith.constant 0 : index
    %1 = vector.load %arg2[%c0_2, %c0_3, %c0_4] : memref<2x2x1xf32, #tpu.memory_space<vmem>>, vector<2x2x1xf32>
    %cst = arith.constant dense<0.000000e+00> : vector<2x128xf32>
    %2 = vector.multi_reduction <add>, %0, %cst [0] : vector<2x2x128xf32> to vector<2x128xf32>
    %3 = vector.shape_cast %2 : vector<2x128xf32> to vector<1x2x128xf32>
    %cst_5 = arith.constant 5.000000e-01 : f32
    %4 = vector.broadcast %cst_5 : f32 to vector<1x2x128xf32>
    %5 = arith.mulf %3, %4 : vector<1x2x128xf32>
    %6 = vector.extract_strided_slice %1 {offsets = [0, 0, 0], sizes = [2, 1, 1], strides = [1, 1, 1]} : vector<2x2x1xf32> to vector<2x1x1xf32>
    %7 = vector.extract_strided_slice %1 {offsets = [0, 1, 0], sizes = [2, 1, 1], strides = [1, 1, 1]} : vector<2x2x1xf32> to vector<2x1x1xf32>
    %8 = arith.addf %6, %7 : vector<2x1x1xf32>
    %cst_6 = arith.constant 1.000000e+00 : f32
    %9 = vector.broadcast %cst_6 : f32 to vector<2x1x1xf32>
    %10 = arith.divf %9, %8 : vector<2x1x1xf32>
    %11 = arith.mulf %6, %10 : vector<2x1x1xf32>
    %12 = arith.mulf %7, %10 : vector<2x1x1xf32>
    %13 = vector.broadcast %11 : vector<2x1x1xf32> to vector<2x2x128xf32>
    %14 = arith.mulf %13, %0 : vector<2x2x128xf32>
    %15 = vector.broadcast %12 : vector<2x1x1xf32> to vector<2x2x128xf32>
    %16 = vector.broadcast %5 : vector<1x2x128xf32> to vector<2x2x128xf32>
    %17 = arith.mulf %15, %16 : vector<2x2x128xf32>
    %18 = arith.addf %14, %17 : vector<2x2x128xf32>
    %c0_7 = arith.constant 0 : index
    %c0_8 = arith.constant 0 : index
    %c0_9 = arith.constant 0 : index
    %19 = vector.load %arg3[%c0_7, %c0_8, %c0_9] : memref<2x2x128xf32, #tpu.memory_space<vmem>>, vector<2x2x128xf32>
    tpu.vector_store %arg3[%c0_7, %c0_8, %c0_9], %18 {strides = array<i32>} : memref<2x2x128xf32, #tpu.memory_space<vmem>>, vector<2x2x128xf32>,
    return
  }
  func.func @transform_0(%arg0: i32) -> (i32, i32, i32) {
    %c0_i32 = arith.constant 0 : i32
    %c0_i32_0 = arith.constant 0 : i32
    %c0_i32_1 = arith.constant 0 : i32
    return %c0_i32, %arg0, %c0_i32_0 : i32, i32, i32
  }
  func.func @transform_1(%arg0: i32) -> (i32, i32, i32) {
    %c0_i32 = arith.constant 0 : i32
    %c0_i32_0 = arith.constant 0 : i32
    %c0_i32_1 = arith.constant 0 : i32
    %c0_i32_2 = arith.constant 0 : i32
    return %c0_i32, %c0_i32_0, %c0_i32_1 : i32, i32, i32
  }
  func.func @transform_2(%arg0: i32) -> (i32, i32, i32) {
    %c0_i32 = arith.constant 0 : i32
    %c0_i32_0 = arith.constant 0 : i32
    %c0_i32_1 = arith.constant 0 : i32
    return %c0_i32, %arg0, %c0_i32_0 : i32, i32, i32
  }
}

</mosaic_0001>

<llo_original>
// kernel: addmean.1
$region0: #{addmean.1}
  #allocation0 [shape = 'u32[]', space=smem, size = 0x4, offset = 0x4, fixed_abs, tag = 'smem constant byte address 0x4 - core index']
  #allocation1 [shape = 'u32[144,128]{1,0:T(1,128)}', space=vmem, size = 0x12000, scoped, tag = 'internal scratch']
  %s0 = inlined_call_operand.vmem [shape: f32[2,2,128], index: 0, kind: input, shape index: {}]
  %s1 = inlined_call_operand.vmem [shape: f32[2,2,1], index: 1, kind: input, shape index: {}]
  %s2 = inlined_call_operand.vmem [shape: f32[2,2,128], index: 2, kind: output, shape index: {}]
  %s3 = sld [smem:[#allocation0]]
  $region18: #{addmean.1} parent=0
    _
  %s5 = ssub.s32 1, %s3
  %s6 = scalar_select 0, %s5, %s3
  // Predicated region
  $region2: #{addmean.1} parent=0 // pred_check
    _
  $region3: #{addmean.1} parent=0 // pred_check_branch
    %8 = sbr.rel (0) target = $region5
  $region4: #{addmean.1} parent=0 // pred_region
    _
  $region5: #{addmean.1} parent=0 // pred_fallthru
    _
  // Predicated region
  $region6: #{addmean.1} parent=0 // pred_check
    _
  $region7: #{addmean.1} parent=0 // pred_check_branch
    %10 = sbr.rel (0) target = $region9
  $region8: #{addmean.1} parent=0 // pred_region
    _
  $region9: #{addmean.1} parent=0 // pred_fallthru
    _
  %v11 = vld [vmem:[%s0] sm:$0x3]
  %v12 = vld [vmem:[%s0 + $0x2] sm:$0x3]
  %v13 = vld [vmem:[%s1] sm:$0x3]
  %v14 = vld [vmem:[%s1 + $0x2] sm:$0x3]
  %vm15 = vcmask 1041408
  %v16 = vsel %vm15, %v11, 0.0
  %v17 = vsel %vm15, %v12, 0.0
  %v18 = vadd.f32 %v16, %v17
  %v19 = vmul.f32 %v18, 0.5
  %v22 = vrot.slane %v13, 1
  %v23 = vrot.slane %v14, 1
  %v26 = vadd.f32 %v13, %v22
  %v27 = vadd.f32 %v14, %v23
  %v28 = vrcp.pop %v26
  %v29 = vmul.f32 1.0, %v28
  %v30 = vrcp.pop %v27
  %v31 = vmul.f32 1.0, %v30
  %v32 = vmul.f32 %v13, %v29
  %v33 = vmul.f32 %v14, %v31
  %v36 = vrot.slane %v29, 7
  %v37 = vrot.slane %v31, 7
  %v40 = vmul.f32 %v13, %v36
  %v41 = vmul.f32 %v14, %v37
  %s43 = vtos %v32
  %v44 = vstv %s43
  %s47 = vtos %v33
  %v48 = vstv %s47
  %v50 = vmul.f32 %v44, %v11
  %v51 = vmul.f32 %v48, %v12
  %v54 = vrot.slane %v40, 1
  %v55 = vrot.slane %v41, 1
  %s56 = vtos %v54
  %v57 = vstv %s56
  %s59 = vtos %v55
  %v60 = vstv %s59
  %v62 = vmul.f32 %v57, %v19
  %v63 = vmul.f32 %v60, %v19
  %v64 = vadd.f32 %v50, %v62
  %v65 = vadd.f32 %v51, %v63
  %66 = vst [vmem:[%s2] sm:$0x3] %v64
  %67 = vst [vmem:[%s2 + $0x2] sm:$0x3] %v65
  // Predicated region
  $region10: #{addmean.1} parent=0 // pred_check
    _
  $region11: #{addmean.1} parent=0 // pred_check_branch
    %69 = sbr.rel (0) target = $region13
  $region12: #{addmean.1} parent=0 // pred_region
    _
  $region13: #{addmean.1} parent=0 // pred_fallthru
    _
  // Predicated region
  $region14: #{addmean.1} parent=0 // pred_check
    _
  $region15: #{addmean.1} parent=0 // pred_check_branch
    %71 = sbr.rel (0) target = $region17
  $region16: #{addmean.1} parent=0 // pred_region
    _
  $region17: #{addmean.1} parent=0 // pred_fallthru
    _

</llo_original>
